<compile_context>
chip_gen: v6e
topology: v6e:2x2x1
jax: 0.10.0
libtpu: 0.0.40
codegen_flags: <defaults>
</compile_context>

<pallas_src>
import jax
import jax.numpy as jnp
from jax.experimental import pallas as pl
from jax.experimental.pallas import tpu as pltpu


# ----------------------------------------------------------------------------
# Pallas kernel: joint + fc  (enc projection + tanh once per T-tile, class-tiled fc2)
# ----------------------------------------------------------------------------
def _joint_fc_kernel(enc_ref, decp_ref, w1e_ref, w2_ref, out_ref, h_ref):
    # enc_ref : (1, tT, D)       T-tile of one batch element of encoder outputs
    # decp_ref: (1, U_pad, D)    hoisted decoder projection (dec @ W1d + b1), padded U
    # w1e_ref : (D, D)           top half of first Linear weight (multiplies enc)
    # w2_ref  : (D, tC)          class tile of the second Linear weight (no bias)
    # out_ref : (1, tT, U_pad, tC)
    # h_ref   : (tT, U_pad, D)   VMEM scratch — tanh activation, reused across c-tiles

    # Compute the activation only once per (batch, T-tile); the class axis is
    # the innermost ("arbitrary") grid axis and reuses it from VMEM scratch.
    @pl.when(pl.program_id(2) == 0)
    def _():
        enc_p = jnp.dot(enc_ref[0], w1e_ref[...],
                        preferred_element_type=jnp.float32)          # (tT, D) f32
        dec_p = decp_ref[0].astype(jnp.float32)                      # (U_pad, D)
        h = jnp.tanh(enc_p[:, None, :] + dec_p[None, :, :])          # (tT, U_pad, D)
        h_ref[...] = h.astype(h_ref.dtype)

    tT, U_pad, D = h_ref.shape
    # Lane-aligned 2-D matmul onto the padded class tile; reshapes are
    # layout-free because U_pad is a sublane multiple.
    h2 = h_ref[...].reshape(tT * U_pad, D)
    logits = jnp.dot(h2, w2_ref[...], preferred_element_type=jnp.float32)  # (tT*U_pad, tC)
    out_ref[0] = logits.reshape(tT, U_pad, -1).astype(out_ref.dtype)
    # TODO(synk): when n_c == 1 the RNNT-loss log_softmax over the class dim
    #             could be fused here (before the store) to save a second HBM
    #             round trip of the logits; left out to preserve the module's
    #             "return raw logits" semantics.


def _round_up(x, m):
    return ((x + m - 1) // m) * m


def _vmem_capacity_bytes():
    try:
        return int(pltpu.get_tpu_info().vmem_capacity_bytes)
    except Exception:
        return 64 * 1024 * 1024  # conservative: v7x per-TensorCore VMEM


def joint_fc(enc, dec, w1, b1, w2, *, t_tile=None, c_tile=None,
             compute_dtype=None, out_dtype=None):
    """enc: (B, T, D), dec: (B, U, D), w1: (2D, D), b1: (D,), w2: (D, C) -> (B, T, U, C)."""
    B, T, D = enc.shape
    U = dec.shape[1]
    C = w2.shape[1]

    out_dt = jnp.dtype(out_dtype) if out_dtype is not None else jnp.dtype(enc.dtype)
    cdt = jnp.dtype(compute_dtype) if compute_dtype is not None else jnp.dtype(jnp.float32)
    w_bytes = cdt.itemsize
    in_bytes = cdt.itemsize
    out_bytes = out_dt.itemsize

    # ---- U padding: make in-kernel reshapes layout-free (sublane pack). ----
    sub = 16 if (cdt.itemsize == 2 or out_bytes == 2) else 8
    U_pad = _round_up(U, sub)

    # ---- Hoist the decoder projection (dec @ W1[D:] + b1) out of the kernel.
    dec_p = jnp.einsum("bud,dk->buk", dec, w1[D:],
                       preferred_element_type=jnp.float32) + b1.astype(jnp.float32)
    if U_pad != U:
        dec_p = jnp.pad(dec_p, ((0, 0), (0, U_pad - U), (0, 0)))
    dec_p = dec_p.astype(cdt)
    w1e = w1[:D].astype(cdt)
    enc_c = enc.astype(cdt)

    # ---- VMEM budget (per-generation; v7x has half the VMEM of v5e/v6e). ----
    cap = _vmem_capacity_bytes()
    budget = int(cap * 0.55)          # headroom for compiler scratch / relayouts
    vmem_limit = int(cap * 0.85)

    # ---- Class tiling: lane-dense, streamed W2 tile capped by budget. ----
    C_pad = _round_up(C, 128)
    if c_tile is not None:
        tC = max(128, (min(c_tile, C_pad) // 128) * 128)
    else:
        cap_c = max(128, (budget // (8 * D * w_bytes) // 128) * 128)  # 2*D*tC*w ≤ budget/4
        k = C_pad // 128
        best = 1
        for d in range(1, k + 1):
            if k % d == 0 and 128 * d <= cap_c:
                best = d
        tC = 128 * best
    C_pad = _round_up(C_pad, tC)
    n_c = C_pad // tC

    w2p = w2.astype(cdt)
    if C_pad != C:
        w2p = jnp.pad(w2p, ((0, 0), (0, C_pad - C)))

    # ---- T tiling from the remaining budget; snap to a divisor of T. ----
    fixed = 2 * D * D * w_bytes + 2 * U_pad * D * w_bytes + 2 * D * tC * w_bytes
    per_t = (2 * D * in_bytes               # enc block, double-buffered
             + U_pad * D * cdt.itemsize     # h scratch
             + 2 * U_pad * tC * out_bytes   # output block, double-buffered
             + U_pad * tC * 4)              # f32 logits intermediate
    tT_cap = max(8, (budget - fixed) // per_t) if budget > fixed else 8
    if t_tile is not None:
        tT_cap = min(tT_cap, max(1, t_tile))
    tT_cap = min(tT_cap, 512)

    if T <= tT_cap:
        tT = T
    else:
        tT = 0
        start = tT_cap - (tT_cap % 8)
        for cand in range(start, 7, -8):
            if T % cand == 0:
                tT = cand
                break
        if tT == 0:
            tT = max(8, start)   # no divisor found: pad T (rare)
    n_t = pl.cdiv(T, tT)
    T_pad = n_t * tT
    if T_pad != T:
        enc_c = jnp.pad(enc_c, ((0, 0), (0, T_pad - T), (0, 0)))

    # ---- Cost estimate (helps XLA overlap encoder/decoder ops with the kernel).
    flops = 2 * B * T_pad * U_pad * D * C_pad + 2 * B * T_pad * D * D
    transc = B * T_pad * U_pad * D
    bytes_acc = (enc_c.size * in_bytes + dec_p.size * cdt.itemsize
                 + w1e.size * w_bytes + w2p.size * w_bytes
                 + B * T_pad * U_pad * C_pad * out_bytes)
    cost = pl.CostEstimate(flops=int(flops), transcendentals=int(transc),
                           bytes_accessed=int(bytes_acc))

    out = pl.pallas_call(
        _joint_fc_kernel,
        out_shape=jax.ShapeDtypeStruct((B, T_pad, U_pad, C_pad), out_dt),
        grid=(B, n_t, n_c),
        in_specs=[
            pl.BlockSpec((1, tT, D), lambda b, t, c: (b, t, 0)),      # enc T-tile
            pl.BlockSpec((1, U_pad, D), lambda b, t, c: (b, 0, 0)),   # dec_p (per batch)
            pl.BlockSpec((D, D), lambda b, t, c: (0, 0)),             # W1 top half
            pl.BlockSpec((D, tC), lambda b, t, c: (0, c)),            # W2 class tile
        ],
        out_specs=pl.BlockSpec((1, tT, U_pad, tC), lambda b, t, c: (b, t, 0, c)),
        scratch_shapes=[pltpu.VMEM((tT, U_pad, D), cdt)],
        compiler_params=pltpu.CompilerParams(
            dimension_semantics=("parallel", "parallel", "arbitrary"),
            vmem_limit_bytes=vmem_limit),
        cost_estimate=cost,
    )(enc_c, dec_p, w1e, w2p)

    return out[:, :T, :U, :C]


# ----------------------------------------------------------------------------
# Deterministic stubs for the sub-modules whose source was not provided.
# ----------------------------------------------------------------------------
def encoder_stub(inputs, input_lengths, w_proj, subsampling_factor=4):
    """(B, S, input_dim) -> (B, S // sub, encoder_dim), lengths // sub."""
    sub = inputs[:, ::subsampling_factor, :]                 # frame subsampling
    enc = jnp.tanh(jnp.einsum("bsi,id->bsd", sub, w_proj))   # cheap projection
    out_lengths = input_lengths // subsampling_factor
    return enc, out_lengths


def decoder_stub(targets, target_lengths, embedding, w_out):
    """(B, U) int tokens -> (B, U, decoder_output_dim)."""
    emb = jnp.take(embedding, targets, axis=0)               # (B, U, H)
    dec = jnp.tanh(jnp.einsum("buh,hd->bud", emb, w_out))
    return dec, target_lengths


# ----------------------------------------------------------------------------
# Full forward (mirrors Conformer.forward)
# ----------------------------------------------------------------------------
def conformer_forward(params, inputs, input_lengths, targets, target_lengths,
                      **joint_kwargs):
    enc_out, enc_len = encoder_stub(inputs, input_lengths, params["enc_proj"])
    dec_out, _ = decoder_stub(targets, target_lengths,
                              params["dec_embed"], params["dec_out"])
    logits = joint_fc(enc_out, dec_out,
                      params["fc1_w"], params["fc1_b"], params["fc2_w"],
                      **joint_kwargs)
    return logits, enc_len


if __name__ == "__main__":
    # Small, self-consistent shapes.
    B = 2                 # batch
    S = 32                # input (pre-subsampling) sequence length
    INPUT_DIM = 16        # spectrogram feature dim
    D = 32                # encoder_dim; decoder_output_dim == encoder_dim
    H = 24                # decoder hidden_state_dim
    U = 6                 # target sequence length
    C = 12                # num_classes
    SUB = 4               # subsampling_factor
    T = S // SUB          # encoder output length

    key = jax.random.PRNGKey(0)
    keys = jax.random.split(key, 8)

    params = {
        "enc_proj": jax.random.normal(keys[0], (INPUT_DIM, D), jnp.float32) * 0.1,
        "dec_embed": jax.random.normal(keys[1], (C, H), jnp.float32) * 0.1,
        "dec_out": jax.random.normal(keys[2], (H, D), jnp.float32) * 0.1,
        # fc: Linear(2D -> D) with bias, Tanh, Linear(D -> C) no bias
        "fc1_w": jax.random.normal(keys[3], (2 * D, D), jnp.float32) * 0.05,
        "fc1_b": jax.random.normal(keys[4], (D,), jnp.float32) * 0.05,
        "fc2_w": jax.random.normal(keys[5], (D, C), jnp.float32) * 0.05,
    }

    inputs = jax.random.normal(keys[6], (B, S, INPUT_DIM), jnp.float32)
    input_lengths = jnp.array([S, S - 4], dtype=jnp.int32)
    targets = jax.random.randint(keys[7], (B, U), 0, C, dtype=jnp.int32)
    target_lengths = jnp.array([U, U - 1], dtype=jnp.int32)

    # ---- f32 path (exactness check vs the concat reference) -----------------
    logits, enc_len = conformer_forward(params, inputs, input_lengths,
                                        targets, target_lengths)
    logits = jax.block_until_ready(logits)

    enc_out, _ = encoder_stub(inputs, input_lengths, params["enc_proj"])
    dec_out, _ = decoder_stub(targets, target_lengths,
                              params["dec_embed"], params["dec_out"])
    enc_e = jnp.broadcast_to(enc_out[:, :, None, :], (B, T, U, D))
    dec_e = jnp.broadcast_to(dec_out[:, None, :, :], (B, T, U, D))
    cat = jnp.concatenate([enc_e, dec_e], axis=-1)
    ref = jnp.tanh(cat @ params["fc1_w"] + params["fc1_b"]) @ params["fc2_w"]

    assert logits.shape == (B, T, U, C), logits.shape
    assert jnp.allclose(logits, ref, atol=1e-5, rtol=1e-5)

    # ---- bf16 compute + bf16 output path (loose check; production setting) --
    logits_bf16, _ = conformer_forward(params, inputs, input_lengths,
                                       targets, target_lengths,
                                       compute_dtype=jnp.bfloat16,
                                       out_dtype=jnp.bfloat16)
    logits_bf16 = jax.block_until_ready(logits_bf16)
    assert logits_bf16.shape == (B, T, U, C)
    assert bool(jnp.all(jnp.isfinite(logits_bf16.astype(jnp.float32))))
    assert jnp.allclose(logits_bf16.astype(jnp.float32), ref, atol=0.1, rtol=0.1)

    print("KERNEL_OK")
</pallas_src>

<mosaic_0001>
module attributes {stable_mosaic.version = 11 : i64} {
  func.func @_joint_fc_kernel(%arg0: i32, %arg1: i32, %arg2: i32, %arg3: memref<1x8x32xf32, #tpu.memory_space<vmem>>, %arg4: memref<1x8x32xf32, #tpu.memory_space<vmem>>, %arg5: memref<32x32xf32, #tpu.memory_space<vmem>>, %arg6: memref<32x128xf32, #tpu.memory_space<vmem>>, %arg7: memref<1x8x8x128xf32, #tpu.memory_space<vmem>>, %arg8: memref<8x8x32xf32, #tpu.memory_space<vmem>>) attributes {dimension_semantics = [#tpu.dimension_semantics<parallel>, #tpu.dimension_semantics<parallel>, #tpu.dimension_semantics<arbitrary>], iteration_bounds = array<i64: 2, 1, 1>, scalar_prefetch = 0 : i64, scratch_operands = 1 : i64, tpu.core_type = #tpu.core_type<tc>, window_params = [{transform_indices = @transform_0, window_bounds = array<i64: 1, 8, 32>}, {transform_indices = @transform_1, window_bounds = array<i64: 1, 8, 32>}, {pipeline_mode = #tpu.pipeline_mode<synchronous>, transform_indices = @transform_2, window_bounds = array<i64: 32, 32>}, {transform_indices = @transform_3, window_bounds = array<i64: 32, 128>}, {transform_indices = @transform_4, window_bounds = array<i64: 1, 8, 8, 128>}]} {
    %c0_i32 = arith.constant 0 : i32
    %0 = arith.cmpi eq, %arg2, %c0_i32 : i32
    %1 = arith.extui %0 : i1 to i32
    %c0_i32_0 = arith.constant 0 : i32
    %2 = arith.cmpi ne, %1, %c0_i32_0 : i32
    scf.if %2 {
      %c0_9 = arith.constant 0 : index
      %c0_10 = arith.constant 0 : index
      %c0_11 = arith.constant 0 : index
      %11 = vector.load %arg3[%c0_9, %c0_10, %c0_11] : memref<1x8x32xf32, #tpu.memory_space<vmem>>, vector<1x8x32xf32>
      %12 = vector.shape_cast %11 : vector<1x8x32xf32> to vector<8x32xf32>
      %c0_12 = arith.constant 0 : index
      %c0_13 = arith.constant 0 : index
      %13 = vector.load %arg5[%c0_12, %c0_13] : memref<32x32xf32, #tpu.memory_space<vmem>>, vector<32x32xf32>
      %cst_14 = arith.constant dense<0.000000e+00> : vector<8x32xf32>
      %14 = tpu.matmul %12, %13, %cst_14 {dimension_numbers = #tpu.dot_dimension_numbers<[1], [0], [0], [1], [0, 0, 1, 1], [], []>} : vector<8x32xf32>, vector<32x32xf32>, vector<8x32xf32> -> vector<8x32xf32>
      %c0_15 = arith.constant 0 : index
      %c0_16 = arith.constant 0 : index
      %c0_17 = arith.constant 0 : index
      %15 = vector.load %arg4[%c0_15, %c0_16, %c0_17] : memref<1x8x32xf32, #tpu.memory_space<vmem>>, vector<1x8x32xf32>
      %16 = vector.shape_cast %15 : vector<1x8x32xf32> to vector<8x32xf32>
      %17 = vector.shape_cast %14 : vector<8x32xf32> to vector<8x1x32xf32>
      %18 = vector.shape_cast %16 : vector<8x32xf32> to vector<1x8x32xf32>
      %19 = vector.broadcast %17 : vector<8x1x32xf32> to vector<8x8x32xf32>
      %20 = vector.broadcast %18 : vector<1x8x32xf32> to vector<8x8x32xf32>
      %21 = arith.addf %19, %20 : vector<8x8x32xf32>
      %22 = math.tanh %21 : vector<8x8x32xf32>
      %c0_18 = arith.constant 0 : index
      %c0_19 = arith.constant 0 : index
      %c0_20 = arith.constant 0 : index
      %23 = vector.load %arg8[%c0_18, %c0_19, %c0_20] : memref<8x8x32xf32, #tpu.memory_space<vmem>>, vector<8x8x32xf32>
      tpu.vector_store %arg8[%c0_18, %c0_19, %c0_20], %22 {strides = array<i32>} : memref<8x8x32xf32, #tpu.memory_space<vmem>>, vector<8x8x32xf32>,
    } else {
    }
    %c0 = arith.constant 0 : index
    %c0_1 = arith.constant 0 : index
    %c0_2 = arith.constant 0 : index
    %3 = vector.load %arg8[%c0, %c0_1, %c0_2] : memref<8x8x32xf32, #tpu.memory_space<vmem>>, vector<8x8x32xf32>
    %4 = vector.shape_cast %3 : vector<8x8x32xf32> to vector<64x32xf32>
    %c0_3 = arith.constant 0 : index
    %c0_4 = arith.constant 0 : index
    %5 = vector.load %arg6[%c0_3, %c0_4] : memref<32x128xf32, #tpu.memory_space<vmem>>, vector<32x128xf32>
    %cst = arith.constant dense<0.000000e+00> : vector<64x128xf32>
    %6 = tpu.matmul %4, %5, %cst {dimension_numbers = #tpu.dot_dimension_numbers<[1], [0], [0], [1], [0, 0, 1, 1], [], []>} : vector<64x32xf32>, vector<32x128xf32>, vector<64x128xf32> -> vector<64x128xf32>
    %7 = vector.shape_cast %6 : vector<64x128xf32> to vector<8x8x128xf32>
    %c0_5 = arith.constant 0 : index
    %c0_6 = arith.constant 0 : index
    %c0_7 = arith.constant 0 : index
    %c0_8 = arith.constant 0 : index
    %8 = vector.load %arg7[%c0_5, %c0_6, %c0_7, %c0_8] : memref<1x8x8x128xf32, #tpu.memory_space<vmem>>, vector<1x8x8x128xf32>
    %9 = vector.shape_cast %8 : vector<1x8x8x128xf32> to vector<8x8x128xf32>
    %10 = vector.shape_cast %7 : vector<8x8x128xf32> to vector<1x8x8x128xf32>
    tpu.vector_store %arg7[%c0_5, %c0_6, %c0_7, %c0_8], %10 {strides = array<i32>} : memref<1x8x8x128xf32, #tpu.memory_space<vmem>>, vector<1x8x8x128xf32>,
    return
  }
  func.func @transform_0(%arg0: i32, %arg1: i32, %arg2: i32) -> (i32, i32, i32) {
    %c0_i32 = arith.constant 0 : i32
    %c0_i32_0 = arith.constant 0 : i32
    return %arg0, %arg1, %c0_i32 : i32, i32, i32
  }
  func.func @transform_1(%arg0: i32, %arg1: i32, %arg2: i32) -> (i32, i32, i32) {
    %c0_i32 = arith.constant 0 : i32
    %c0_i32_0 = arith.constant 0 : i32
    %c0_i32_1 = arith.constant 0 : i32
    return %arg0, %c0_i32, %c0_i32_0 : i32, i32, i32
  }
  func.func @transform_2(%arg0: i32, %arg1: i32, %arg2: i32) -> (i32, i32) {
    %c0_i32 = arith.constant 0 : i32
    %c0_i32_0 = arith.constant 0 : i32
    %c0_i32_1 = arith.constant 0 : i32
    return %c0_i32, %c0_i32_0 : i32, i32
  }
  func.func @transform_3(%arg0: i32, %arg1: i32, %arg2: i32) -> (i32, i32) {
    %c0_i32 = arith.constant 0 : i32
    %c0_i32_0 = arith.constant 0 : i32
    return %c0_i32, %arg2 : i32, i32
  }
  func.func @transform_4(%arg0: i32, %arg1: i32, %arg2: i32) -> (i32, i32, i32, i32) {
    %c0_i32 = arith.constant 0 : i32
    %c0_i32_0 = arith.constant 0 : i32
    return %arg0, %arg1, %c0_i32, %arg2 : i32, i32, i32, i32
  }
}

</mosaic_0001>

<llo_original>
// kernel: tpu_custom_call.1
$region0: #{tpu_custom_call.1}
  #allocation0 [shape = 'u32[]', space=smem, size = 0x4, offset = 0x4, fixed_abs, tag = 'smem constant byte address 0x4 - core index']
  #allocation1 [shape = 'u32[144,128]{1,0:T(1,128)}', space=vmem, size = 0x12000, scoped, tag = 'internal scratch']
  #allocation2 [shape = 'f32[8,8,32]{2,1,0:T(8,128)}', space=vmem, size = 0x8000, scoped, tag = 'scratch operand']
  %s0 = inlined_call_operand.hbm [shape: f32[2,8,32], index: 0, kind: input, shape index: {}]
  %s1 = inlined_call_operand.hbm [shape: f32[2,8,32], index: 1, kind: input, shape index: {}]
  %s2 = inlined_call_operand.hbm [shape: f32[32,32], index: 2, kind: input, shape index: {}]
  %s3 = inlined_call_operand.hbm [shape: f32[32,128], index: 3, kind: input, shape index: {}]
  %s4 = inlined_call_operand.hbm [shape: f32[2,8,8,128], index: 4, kind: output, shape index: {}]
  %s5 = sld [smem:[#allocation0]]
  $region69: #{tpu_custom_call.1} parent=0
    _
  %s7 = ssub.s32 1, %s5
  %s8 = scalar_select 0, %s7, %s5
  $region1: #{tpu_custom_call.1} parent=0
    #allocation3 [shape = 'u8[8192]{0}', space=vmem, size = 0x2000, scoped, tag = 'input window, operand 0']
    #allocation4 [shape = 's32[2]{0}', space=sflag, size = 0x8, scoped, tag = 'scoped memory for tpu_custom_call.1']
    #allocation5 [shape = 's32[2]{0}', space=sflag, size = 0x8, scoped, tag = 'scoped memory for tpu_custom_call.1']
    #allocation6 [shape = 'u8[8192]{0}', space=vmem, size = 0x2000, scoped, tag = 'input window, operand 1']
    #allocation7 [shape = 's32[2]{0}', space=sflag, size = 0x8, scoped, tag = 'scoped memory for tpu_custom_call.1']
    #allocation8 [shape = 'u8[16384]{0}', space=vmem, size = 0x4000, scoped, tag = 'input window, operand 2, single buffered']
    #allocation9 [shape = 'u8[16384]{0}', space=vmem, size = 0x4000, scoped, tag = 'input window, operand 3, single buffered']
    #allocation10 [shape = 's32[1]{0}', space=sflag, size = 0x4, scoped, tag = 'scoped memory for tpu_custom_call.1']
    #allocation11 [shape = 'u8[65536]{0}', space=vmem, size = 0x10000, scoped, tag = 'output window, operand 0']
    %9 = vsyncpa [#allocation4], 0
    %s10 = scalar_lea.sflag [#allocation4], 1
    %11 = vsyncpa %s10, 0
    %12 = vsyncpa [#allocation7], 0
    %s13 = scalar_lea.sflag [#allocation7], 1
    %14 = vsyncpa %s13, 0
    %15 = vsyncpa [#allocation10], 0
    %16 = vsyncpa [#allocation5], 0
    %s17 = scalar_lea.sflag [#allocation5], 1
    %18 = vsyncpa %s17, 0
    loop: start=0, step=1, limit=4
    $region2: #{tpu_custom_call.1} parent=1 // loop_pre_header
      _
    $region3: #{tpu_custom_call.1} parent=1 // loop_header
      %s20 = sphi 0, %s24
      %p21 = scmp.ge.s32.totalorder %s20, 4
      %s27 = sphi 0, %s46
      %s28 = sphi 0, %s42
      %s29 = sphi 0, %s38
      %s30 = sphi 0, %s27
      %s31 = sphi 0, %s28
      %s32 = sphi 0, %s29
      %s33 = sphi 0, %s30
      %s34 = sphi 0, %s31
      %s35 = sphi 0, %s32
      %s51 = sphi 0, %s53
      %s54 = sphi 0, %s51
      %s55 = sphi 0, %s54
      %s71 = sphi 0, %s55
      %s77 = sphi 0, %s79
      %s80 = sphi 0, %s77
      %s81 = sphi 0, %s80
      %s97 = sphi 0, %s81
      %s101 = sphi 0, %s101
      %s103 = sphi 0, %s101
      %s104 = sphi 0, %s103
      %s118 = sphi 0, %s104
      %s124 = sphi 0, %s126
      %s127 = sphi 0, %s124
      %s128 = sphi 0, %s127
      %s144 = sphi 0, %s128
      %s154 = sphi 0, %s156
      %s157 = sphi 0, %s154
      %s158 = sphi 0, %s157
      %s174 = sphi 0, %s158
    $region4: #{tpu_custom_call.1} parent=1 // loop_header_branch
      %23 = sbr.rel (%p21) target = $region8
    $region5: #{tpu_custom_call.1} parent=1 // loop_body
      %s25 = ssub.s32 %s20, 1
      %s26 = ssub.s32 %s20, 2
      %s36 = sadd.s32 1, %s29
      %p37 = scmp.ge.s32.totalorder %s36, 1
      %s38 = scalar_select %p37, 0, %s36
      %s39 = sadd.s32 1, %s28
      %s40 = scalar_select %p37, %s39, %s28
      %p41 = scmp.ge.s32.totalorder %s40, 1
      %s42 = scalar_select %p41, 0, %s40
      %s43 = sadd.s32 1, %s27
      %s44 = scalar_select %p41, %s43, %s27
      %p45 = scmp.ge.s32.totalorder %s44, 2
      %s46 = scalar_select %p45, 0, %s44
      %s47 = ssub.s32 %s27, %s46
      %s48 = ssub.s32 %s28, %s42
      %s49 = sor.u32 %s47, %s48
      %p50 = scmp.eq.s32.totalorder %s49, 0
      %s52 = sadd.s32 %s51, 1
      %s53 = scalar_select %p50, %s51, %s52
      %p56 = pneg %p50
      %p57 = scmp.eq.s32.totalorder %s20, 1
      %p58 = por %p56, %p57
      %p59 = scmp.ne.s32.totalorder %s51, %s54
      %p60 = scmp.eq.s32.totalorder %s20, 0
      %p61 = por %p59, %p60
      %p62 = scmp.ne.s32.totalorder %s51, %s54
      %p63 = scmp.eq.s32.totalorder %s25, 1
      %p64 = por %p62, %p63
      %p65 = scmp.ne.s32.totalorder %s54, %s55
      %p66 = scmp.eq.s32.totalorder %s25, 0
      %p67 = por %p65, %p66
      %p68 = scmp.ne.s32.totalorder %s54, %s55
      %p69 = scmp.eq.s32.totalorder %s26, 1
      %p70 = por %p68, %p69
      %p72 = scmp.ne.s32.totalorder %s55, %s71
      %p73 = scmp.eq.s32.totalorder %s26, 0
      %p74 = por %p72, %p73
      %s75 = ssub.s32 %s27, %s46
      %p76 = scmp.eq.s32.totalorder %s75, 0
      %s78 = sadd.s32 %s77, 1
      %s79 = scalar_select %p76, %s77, %s78
      %p82 = pneg %p76
      %p83 = scmp.eq.s32.totalorder %s20, 1
      %p84 = por %p82, %p83
      %p85 = scmp.ne.s32.totalorder %s77, %s80
      %p86 = scmp.eq.s32.totalorder %s20, 0
      %p87 = por %p85, %p86
      %p88 = scmp.ne.s32.totalorder %s77, %s80
      %p89 = scmp.eq.s32.totalorder %s25, 1
      %p90 = por %p88, %p89
      %p91 = scmp.ne.s32.totalorder %s80, %s81
      %p92 = scmp.eq.s32.totalorder %s25, 0
      %p93 = por %p91, %p92
      %p94 = scmp.ne.s32.totalorder %s80, %s81
      %p95 = scmp.eq.s32.totalorder %s26, 1
      %p96 = por %p94, %p95
      %p98 = scmp.ne.s32.totalorder %s81, %s97
      %p99 = scmp.eq.s32.totalorder %s26, 0
      %p100 = por %p98, %p99
      %s102 = sadd.s32 %s101, 1
      %p105 = scmp.eq.s32.totalorder %s20, 1
      %p106 = scmp.ne.s32.totalorder %s101, %s103
      %p107 = scmp.eq.s32.totalorder %s20, 0
      %p108 = por %p106, %p107
      %p109 = scmp.ne.s32.totalorder %s101, %s103
      %p110 = scmp.eq.s32.totalorder %s25, 1
      %p111 = por %p109, %p110
      %p112 = scmp.ne.s32.totalorder %s103, %s104
      %p113 = scmp.eq.s32.totalorder %s25, 0
      %p114 = por %p112, %p113
      %p115 = scmp.ne.s32.totalorder %s103, %s104
      %p116 = scmp.eq.s32.totalorder %s26, 1
      %p117 = por %p115, %p116
      %p119 = scmp.ne.s32.totalorder %s104, %s118
      %p120 = scmp.eq.s32.totalorder %s26, 0
      %p121 = por %p119, %p120
      %s122 = ssub.s32 %s29, %s38
      %p123 = scmp.eq.s32.totalorder %s122, 0
      %s125 = sadd.s32 %s124, 1
      %s126 = scalar_select %p123, %s124, %s125
      %p129 = pneg %p123
      %p130 = scmp.eq.s32.totalorder %s20, 1
      %p131 = por %p129, %p130
      %p132 = scmp.ne.s32.totalorder %s124, %s127
      %p133 = scmp.eq.s32.totalorder %s20, 0
      %p134 = por %p132, %p133
      %p135 = scmp.ne.s32.totalorder %s124, %s127
      %p136 = scmp.eq.s32.totalorder %s25, 1
      %p137 = por %p135, %p136
      %p138 = scmp.ne.s32.totalorder %s127, %s128
      %p139 = scmp.eq.s32.totalorder %s25, 0
      %p140 = por %p138, %p139
      %p141 = scmp.ne.s32.totalorder %s127, %s128
      %p142 = scmp.eq.s32.totalorder %s26, 1
      %p143 = por %p141, %p142
      %p145 = scmp.ne.s32.totalorder %s128, %s144
      %p146 = scmp.eq.s32.totalorder %s26, 0
      %p147 = por %p145, %p146
      %s148 = ssub.s32 %s27, %s46
      %s149 = ssub.s32 %s28, %s42
      %s150 = sor.u32 %s148, %s149
      %s151 = ssub.s32 %s29, %s38
      %s152 = sor.u32 %s150, %s151
      %p153 = scmp.eq.s32.totalorder %s152, 0
      %s155 = sadd.s32 %s154, 1
      %s156 = scalar_select %p153, %s154, %s155
      %p159 = pneg %p153
      %p160 = scmp.eq.s32.totalorder %s20, 1
      %p161 = por %p159, %p160
      %p162 = scmp.ne.s32.totalorder %s154, %s157
      %p163 = scmp.eq.s32.totalorder %s20, 0
      %p164 = por %p162, %p163
      %p165 = scmp.ne.s32.totalorder %s154, %s157
      %p166 = scmp.eq.s32.totalorder %s25, 1
      %p167 = por %p165, %p166
      %p168 = scmp.ne.s32.totalorder %s157, %s158
      %p169 = scmp.eq.s32.totalorder %s25, 0
      %p170 = por %p168, %p169
      %p171 = scmp.ne.s32.totalorder %s157, %s158
      %p172 = scmp.eq.s32.totalorder %s26, 1
      %p173 = por %p171, %p172
      %p175 = scmp.ne.s32.totalorder %s158, %s174
      %p176 = scmp.eq.s32.totalorder %s26, 0
      %p177 = por %p175, %p176
      %p178 = scmp.le.s32.totalorder 1, %s20
      %p179 = scmp.lt.s32.totalorder %s20, 3
      %p180 = pnand %p178, %p179
      %p181 = pneg %p180
      // Predicated region
      $region9: #{tpu_custom_call.1} parent=5 // pred_check
        _
      $region10: #{tpu_custom_call.1} parent=5 // pred_check_branch
        %183 = sbr.rel (%p180) target = $region12
      $region11: #{tpu_custom_call.1} parent=5 // pred_region
        %s184 = ssub.s32 %s20, 1
        // Predicated region
        $region13: #{tpu_custom_call.1} parent=11 // pred_check
          %p185 = pneg %p114
        $region14: #{tpu_custom_call.1} parent=11 // pred_check_branch
          %187 = sbr.rel (%p185) target = $region16
        $region15: #{tpu_custom_call.1} parent=11 // pred_region
          %s189 = ssub.s32 512, 512
          %190 = vsyncadd [#allocation7], %s189
          %s191 = sshll.u32 [#allocation8], 4
          %s192 = int_to_ptr.vmem [resolvable:$true] %s191
          %197 = dma.hbm_to_vmem [thread:$0]  %s2, 512, %s192, [#allocation7], 128, 128, 8
        $region16: #{tpu_custom_call.1} parent=11 // pred_fallthru
          _
        // Predicated region
        $region17: #{tpu_custom_call.1} parent=11 // pred_check
          %p198 = pneg %p140
        $region18: #{tpu_custom_call.1} parent=11 // pred_check_branch
          %200 = sbr.rel (%p198) target = $region20
        $region19: #{tpu_custom_call.1} parent=11 // pred_region
          %s202 = ssub.s32 512, 512
          %203 = vsyncadd [#allocation10], %s202
          %s204 = smul.addr %s32, 128
          %s205 = scalar_lea.hbm %s3, %s204
          %s206 = sshll.u32 [#allocation9], 4
          %s207 = int_to_ptr.vmem [resolvable:$true] %s206
          %212 = dma.hbm_to_vmem [thread:$0]  %s205, 512, %s207, [#allocation10], 128, 128, 8
        $region20: #{tpu_custom_call.1} parent=11 // pred_fallthru
          _
      $region12: #{tpu_custom_call.1} parent=5 // pred_fallthru
        _
      %p213 = scmp.lt.s32.totalorder %s20, 2
      // Predicated region
      $region21: #{tpu_custom_call.1} parent=5 // pred_check
        %p214 = pneg %p213
      $region22: #{tpu_custom_call.1} parent=5 // pred_check_branch
        %216 = sbr.rel (%p214) target = $region24
      $region23: #{tpu_custom_call.1} parent=5 // pred_region
        // Predicated region
        $region25: #{tpu_custom_call.1} parent=23 // pred_check
          %p217 = pneg %p61
        $region26: #{tpu_custom_call.1} parent=23 // pred_check_branch
          %219 = sbr.rel (%p217) target = $region28
        $region27: #{tpu_custom_call.1} parent=23 // pred_region
          %s220 = sand.u32 %s51, 1
          %s221 = scalar_lea.sflag [#allocation4], %s220
          %s222 = sand.u32 %s51, 1
          %s223 = smul.addr %s222, 8
          %s224 = scalar_lea.vmem [#allocation3], %s223
          %s226 = ssub.s32 128, 128
          %227 = vsyncadd %s221, %s226
          %s228 = sadd.s32 %s28, %s27
          %s229 = smul.addr %s228, 128
          %s230 = scalar_lea.hbm %s0, %s229
          %s232 = sshll.u32 %s224, 4
          %s233 = int_to_ptr.vmem [resolvable:$true] %s232
          %235 = dma.hbm_to_vmem [thread:$0]  %s230, 128, %s233, %s221
        $region28: #{tpu_custom_call.1} parent=23 // pred_fallthru
          _
        // Predicated region
        $region29: #{tpu_custom_call.1} parent=23 // pred_check
          %p236 = pneg %p87
        $region30: #{tpu_custom_call.1} parent=23 // pred_check_branch
          %238 = sbr.rel (%p236) target = $region32
        $region31: #{tpu_custom_call.1} parent=23 // pred_region
          %s239 = sand.u32 %s20, 1
          %s240 = scalar_lea.sflag [#allocation7], %s239
          %s241 = sand.u32 %s77, 1
          %s242 = smul.addr %s241, 8
          %s243 = scalar_lea.vmem [#allocation6], %s242
          %s245 = ssub.s32 128, 128
          %246 = vsyncadd %s240, %s245
          %s247 = smul.addr %s27, 128
          %s248 = scalar_lea.hbm %s1, %s247
          %s250 = sshll.u32 %s243, 4
          %s251 = int_to_ptr.vmem [resolvable:$true] %s250
          %253 = dma.hbm_to_vmem [thread:$0]  %s248, 128, %s251, %s240
        $region32: #{tpu_custom_call.1} parent=23 // pred_fallthru
          _
      $region24: #{tpu_custom_call.1} parent=5 // pred_fallthru
        _
      %p254 = scmp.le.s32.totalorder 1, %s20
      %p255 = scmp.lt.s32.totalorder %s20, 3
      %p256 = pnand %p254, %p255
      %p257 = pneg %p256
      // Predicated region
      $region33: #{tpu_custom_call.1} parent=5 // pred_check
        _
      $region34: #{tpu_custom_call.1} parent=5 // pred_check_branch
        %259 = sbr.rel (%p256) target = $region36
      $region35: #{tpu_custom_call.1} parent=5 // pred_region
        %s260 = ssub.s32 %s20, 1
        %s261 = sand.u32 %s54, 1
        %s262 = scalar_lea.sflag [#allocation4], %s261
        %s263 = sand.u32 %s54, 1
        %s264 = smul.addr %s263, 8
        %s265 = scalar_lea.vmem [#allocation3], %s264
        // Predicated region
        $region37: #{tpu_custom_call.1} parent=35 // pred_check
          %p266 = pneg %p67
        $region38: #{tpu_custom_call.1} parent=35 // pred_check_branch
          %268 = sbr.rel (%p266) target = $region40
        $region39: #{tpu_custom_call.1} parent=35 // pred_region
          %269 = dma.done %s262, 128
        $region40: #{tpu_custom_call.1} parent=35 // pred_fallthru
          _
        %s270 = sand.u32 %s25, 1
        %s271 = scalar_lea.sflag [#allocation7], %s270
        %s272 = sand.u32 %s80, 1
        %s273 = smul.addr %s272, 8
        %s274 = scalar_lea.vmem [#allocation6], %s273
        // Predicated region
        $region41: #{tpu_custom_call.1} parent=35 // pred_check
          %p275 = pneg %p93
        $region42: #{tpu_custom_call.1} parent=35 // pred_check_branch
          %277 = sbr.rel (%p275) target = $region44
        $region43: #{tpu_custom_call.1} parent=35 // pred_region
          %278 = dma.done %s271, 128
        $region44: #{tpu_custom_call.1} parent=35 // pred_fallthru
          _
        // Predicated region
        $region45: #{tpu_custom_call.1} parent=35 // pred_check
          %p279 = pneg %p114
        $region46: #{tpu_custom_call.1} parent=35 // pred_check_branch
          %281 = sbr.rel (%p279) target = $region48
        $region47: #{tpu_custom_call.1} parent=35 // pred_region
          %282 = dma.done [#allocation7], 512
        $region48: #{tpu_custom_call.1} parent=35 // pred_fallthru
          _
        // Predicated region
        $region49: #{tpu_custom_call.1} parent=35 // pred_check
          %p283 = pneg %p140
        $region50: #{tpu_custom_call.1} parent=35 // pred_check_branch
          %285 = sbr.rel (%p283) target = $region52
        $region51: #{tpu_custom_call.1} parent=35 // pred_region
          %286 = dma.done [#allocation10], 512
        $region52: #{tpu_custom_call.1} parent=35 // pred_fallthru
          _
        %s287 = sand.u32 %s54, 1
        %s288 = scalar_lea.sflag [#allocation4], %s287
        %s289 = sand.u32 %s54, 1
        %s290 = smul.addr %s289, 8
        %s291 = scalar_lea.vmem [#allocation3], %s290
        %p292 = pneg %p67
        %p293 = pneg %p64
        %s294 = sand.u32 %s25, 1
        %s295 = scalar_lea.sflag [#allocation7], %s294
        %s296 = sand.u32 %s80, 1
        %s297 = smul.addr %s296, 8
        %s298 = scalar_lea.vmem [#allocation6], %s297
        %p299 = pneg %p93
        %p300 = pneg %p90
        %p301 = pneg %p114
        %p302 = pneg %p111
        %p303 = pneg %p140
        %p304 = pneg %p137
        %p305 = pneg %p170
        %p306 = pneg %p167
        %s307 = sand.u32 %s157, 1
        %s308 = scalar_lea.sflag [#allocation5], %s307
        %s309 = sand.u32 %s157, 1
        %s310 = smul.addr %s309, 64
        %s311 = scalar_lea.vmem [#allocation11], %s310
        %s312 = smul.u32 8, %s31
        %p313 = scmp.eq.s32.totalorder %s32, 0
        // Predicated region
        $region53: #{tpu_custom_call.1} parent=35 // pred_check
          %p314 = pneg %p313
        $region54: #{tpu_custom_call.1} parent=35 // pred_check_branch
          %316 = sbr.rel (%p314) target = $region56
        $region55: #{tpu_custom_call.1} parent=35 // pred_region
          %v317 = vld [vmem:[%s265] sm:$0xff]
          %v318 = vld [vmem:[#allocation8] sm:$0xff]
          %v319 = vld [vmem:[#allocation8 + $0x8] sm:$0xff]
          %v320 = vld [vmem:[#allocation8 + $0x10] sm:$0xff]
          %v321 = vld [vmem:[#allocation8 + $0x18] sm:$0xff]
          %vm322 = vcmask 261120
          %v324 = vsel %vm322, %v317, 0
          %326 = vmatprep.subr.mxu0 0.0
          %327 = vmatpush1.msra.mxu0 0.0
          %328 = vmatprep.subr.mxu0 0.0
          %329 = vmatpush1.msra.mxu0 0.0
          %330 = vmatprep.subr.mxu0 0.0
          %331 = vmatpush1.msra.mxu0 0.0
          %332 = vmatprep.subr.mxu0 0.0
          %333 = vmatpush1.msra.mxu0 0.0
          %334 = vmatprep.subr.mxu0 0.0
          %335 = vmatpush1.msra.mxu0 0.0
          %336 = vmatprep.subr.mxu0 0.0
          %337 = vmatpush1.msra.mxu0 0.0
          %338 = vmatprep.subr.mxu0 0.0
          %339 = vmatpush1.msra.mxu0 0.0
          %340 = vmatprep.subr.mxu0 0.0
          %341 = vmatpush1.msra.mxu0 0.0
          %342 = vmatprep.subr.mxu0 0.0
          %343 = vmatpush1.msra.mxu0 0.0
          %344 = vmatprep.subr.mxu0 0.0
          %345 = vmatpush1.msra.mxu0 0.0
          %346 = vmatprep.subr.mxu0 0.0
          %347 = vmatpush1.msra.mxu0 0.0
          %348 = vmatprep.subr.mxu0 0.0
          %349 = vmatpush1.msra.mxu0 0.0
          %350 = vmatprep.subr.mxu0 0.0
          %351 = vmatpush1.msra.mxu0 %v321
          %352 = vmatprep.subr.mxu0 0.0
          %353 = vmatpush1.msra.mxu0 %v320
          %354 = vmatprep.subr.mxu0 0.0
          %355 = vmatpush1.msra.mxu0 %v319
          %356 = vmatprep.subr.mxu0 0.0
          %357 = vmatpush1.msra.mxu0 %v318
          %358 = vmatprep.subr.mxu0 0.0
          %359 = vmatpush2.msra.mxu0 0.0
          %360 = vmatprep.subr.mxu0 0.0
          %361 = vmatpush2.msra.mxu0 0.0
          %362 = vmatprep.subr.mxu0 0.0
          %363 = vmatpush2.msra.mxu0 0.0
          %364 = vmatprep.subr.mxu0 0.0
          %365 = vmatpush2.msra.mxu0 0.0
          %366 = vmatprep.subr.mxu0 0.0
          %367 = vmatpush2.msra.mxu0 0.0
          %368 = vmatprep.subr.mxu0 0.0
          %369 = vmatpush2.msra.mxu0 0.0
          %370 = vmatprep.subr.mxu0 0.0
          %371 = vmatpush2.msra.mxu0 0.0
          %372 = vmatprep.subr.mxu0 0.0
          %373 = vmatpush2.msra.mxu0 0.0
          %374 = vmatprep.subr.mxu0 0.0
          %375 = vmatpush2.msra.mxu0 0.0
          %376 = vmatprep.subr.mxu0 0.0
          %377 = vmatpush2.msra.mxu0 0.0
          %378 = vmatprep.subr.mxu0 0.0
          %379 = vmatpush2.msra.mxu0 0.0
          %380 = vmatprep.subr.mxu0 0.0
          %381 = vmatpush2.msra.mxu0 0.0
          %382 = vmatprep.subr.mxu0 0.0
          %383 = vmatpush2.msra.mxu0 0.0
          %384 = vmatprep.subr.mxu0 0.0
          %385 = vmatpush2.msra.mxu0 0.0
          %386 = vmatprep.subr.mxu0 0.0
          %387 = vmatpush2.msra.mxu0 0.0
          %388 = vmatprep.subr.mxu0 0.0
          %389 = vmatpush2.msra.mxu0 0.0
          %390 = vmatprep.mubr.f32.mxu0 0.0
          %391 = vmatmul.mubr.f32.gmra.mxu0 %v324
          %v392 = vpop.f32.mrf.mxu0
          %v393 = vadd.f32 0.0, %v392
          %v394 = vpop.f32.mrf.mxu0
          %395 = vdwg.mxu0
          %v396 = vld [vmem:[%s274] sm:$0xff]
          %v398 = vcombine.high %v393, %v393
          %v400 = vunpack.c.l.s4 1966171168
          %v401 = vunpack.c.0.s8 %v400
          %v402 = vlaneseq
          %v403 = vshrl.u32 %v402, 7
          %v404 = vsub.s32 %v401, %v403
          %v405 = vrot.slane %v393, %v404
          %v407 = vunpack.c.l.s4 1966171168
          %v408 = vunpack.c.0.s8 %v407
          %v409 = vlaneseq
          %v410 = vshrl.u32 %v409, 7
          %v411 = vsub.s32 %v408, %v410
          %v412 = vrot.slane %v398, %v411
          %v413 = vcombine.high %v405, %v405
          %v414 = vcombine.high %v412, %v412
          %v416 = vunpack.c.l.s4 1966171168
          %v417 = vunpack.c.0.s8 %v416
          %v418 = vlaneseq
          %v419 = vshrl.u32 %v418, 7
          %v420 = vsub.s32 %v417, %v419
          %v421 = vrot.slane %v405, %v420
          %v423 = vunpack.c.l.s4 1966171168
          %v424 = vunpack.c.0.s8 %v423
          %v425 = vlaneseq
          %v426 = vshrl.u32 %v425, 7
          %v427 = vsub.s32 %v424, %v426
          %v428 = vrot.slane %v412, %v427
          %v430 = vunpack.c.l.s4 1966171168
          %v431 = vunpack.c.0.s8 %v430
          %v432 = vlaneseq
          %v433 = vshrl.u32 %v432, 7
          %v434 = vsub.s32 %v431, %v433
          %v435 = vrot.slane %v413, %v434
          %v437 = vunpack.c.l.s4 1966171168
          %v438 = vunpack.c.0.s8 %v437
          %v439 = vlaneseq
          %v440 = vshrl.u32 %v439, 7
          %v441 = vsub.s32 %v438, %v440
          %v442 = vrot.slane %v414, %v441
          %v443 = vcombine.high %v421, %v421
          %v444 = vcombine.high %v428, %v428
          %v445 = vcombine.high %v435, %v435
          %v446 = vcombine.high %v442, %v442
          %v447 = vlaneseq
          %v448 = vshrl.u32 %v447, 7
          %v449 = vsub.s32 0, %v448
          %v450 = vrot.slane %v421, %v449
          %v451 = vlaneseq
          %v452 = vshrl.u32 %v451, 7
          %v453 = vsub.s32 0, %v452
          %v454 = vrot.slane %v435, %v453
          %v455 = vlaneseq
          %v456 = vshrl.u32 %v455, 7
          %v457 = vsub.s32 0, %v456
          %v458 = vrot.slane %v443, %v457
          %v459 = vlaneseq
          %v460 = vshrl.u32 %v459, 7
          %v461 = vsub.s32 0, %v460
          %v462 = vrot.slane %v445, %v461
          %v463 = vlaneseq
          %v464 = vshrl.u32 %v463, 7
          %v465 = vsub.s32 0, %v464
          %v466 = vrot.slane %v428, %v465
          %v467 = vlaneseq
          %v468 = vshrl.u32 %v467, 7
          %v469 = vsub.s32 0, %v468
          %v470 = vrot.slane %v442, %v469
          %v471 = vlaneseq
          %v472 = vshrl.u32 %v471, 7
          %v473 = vsub.s32 0, %v472
          %v474 = vrot.slane %v444, %v473
          %v475 = vlaneseq
          %v476 = vshrl.u32 %v475, 7
          %v477 = vsub.s32 0, %v476
          %v478 = vrot.slane %v446, %v477
          %v487 = vadd.f32 %v450, %v396
          %v488 = vadd.f32 %v454, %v396
          %v489 = vadd.f32 %v458, %v396
          %v490 = vadd.f32 %v462, %v396
          %v491 = vadd.f32 %v466, %v396
          %v492 = vadd.f32 %v470, %v396
          %v493 = vadd.f32 %v474, %v396
          %v494 = vadd.f32 %v478, %v396
          %v495 = vtanh.pop %v487
          %v496 = vtanh.pop %v488
          %v497 = vtanh.pop %v489
          %v498 = vtanh.pop %v490
          %v499 = vtanh.pop %v491
          %v500 = vtanh.pop %v492
          %v501 = vtanh.pop %v493
          %v502 = vtanh.pop %v494
          %503 = vst.msk [vmem:[#allocation2] sm:$0xff] %vm322, %v495
          %504 = vst.msk [vmem:[#allocation2 + $0x8] sm:$0xff] %vm322, %v496
          %505 = vst.msk [vmem:[#allocation2 + $0x10] sm:$0xff] %vm322, %v497
          %506 = vst.msk [vmem:[#allocation2 + $0x18] sm:$0xff] %vm322, %v498
          %507 = vst.msk [vmem:[#allocation2 + $0x20] sm:$0xff] %vm322, %v499
          %508 = vst.msk [vmem:[#allocation2 + $0x28] sm:$0xff] %vm322, %v500
          %509 = vst.msk [vmem:[#allocation2 + $0x30] sm:$0xff] %vm322, %v501
          %510 = vst.msk [vmem:[#allocation2 + $0x38] sm:$0xff] %vm322, %v502
        $region56: #{tpu_custom_call.1} parent=35 // pred_fallthru
          _
        %v511 = vld [vmem:[#allocation2] sm:$0xff]
        %v512 = vld [vmem:[#allocation2 + $0x8] sm:$0xff]
        %v513 = vld [vmem:[#allocation2 + $0x10] sm:$0xff]
        %v514 = vld [vmem:[#allocation2 + $0x18] sm:$0xff]
        %v515 = vld [vmem:[#allocation2 + $0x20] sm:$0xff]
        %v516 = vld [vmem:[#allocation2 + $0x28] sm:$0xff]
        %v517 = vld [vmem:[#allocation2 + $0x30] sm:$0xff]
        %v518 = vld [vmem:[#allocation2 + $0x38] sm:$0xff]
        %v519 = vld [vmem:[#allocation9] sm:$0xff]
        %v520 = vld [vmem:[#allocation9 + $0x8] sm:$0xff]
        %v521 = vld [vmem:[#allocation9 + $0x10] sm:$0xff]
        %v522 = vld [vmem:[#allocation9 + $0x18] sm:$0xff]
        %vm523 = vcmask 261120
        %v525 = vsel %vm523, %v511, 0
        %v528 = vsel %vm523, %v512, 0
        %v531 = vsel %vm523, %v513, 0
        %v534 = vsel %vm523, %v514, 0
        %v537 = vsel %vm523, %v515, 0
        %v540 = vsel %vm523, %v516, 0
        %v543 = vsel %vm523, %v517, 0
        %v546 = vsel %vm523, %v518, 0
        %548 = vmatprep.subr.mxu0 0.0
        %549 = vmatpush1.msra.mxu0 0.0
        %550 = vmatprep.subr.mxu0 0.0
        %551 = vmatpush1.msra.mxu0 0.0
        %552 = vmatprep.subr.mxu0 0.0
        %553 = vmatpush1.msra.mxu0 0.0
        %554 = vmatprep.subr.mxu0 0.0
        %555 = vmatpush1.msra.mxu0 0.0
        %556 = vmatprep.subr.mxu0 0.0
        %557 = vmatpush1.msra.mxu0 0.0
        %558 = vmatprep.subr.mxu0 0.0
        %559 = vmatpush1.msra.mxu0 0.0
        %560 = vmatprep.subr.mxu0 0.0
        %561 = vmatpush1.msra.mxu0 0.0
        %562 = vmatprep.subr.mxu0 0.0
        %563 = vmatpush1.msra.mxu0 0.0
        %564 = vmatprep.subr.mxu0 0.0
        %565 = vmatpush1.msra.mxu0 0.0
        %566 = vmatprep.subr.mxu0 0.0
        %567 = vmatpush1.msra.mxu0 0.0
        %568 = vmatprep.subr.mxu0 0.0
        %569 = vmatpush1.msra.mxu0 0.0
        %570 = vmatprep.subr.mxu0 0.0
        %571 = vmatpush1.msra.mxu0 0.0
        %572 = vmatprep.subr.mxu0 0.0
        %573 = vmatpush1.msra.mxu0 %v522
        %574 = vmatprep.subr.mxu0 0.0
        %575 = vmatpush1.msra.mxu0 %v521
        %576 = vmatprep.subr.mxu0 0.0
        %577 = vmatpush1.msra.mxu0 %v520
        %578 = vmatprep.subr.mxu0 0.0
        %579 = vmatpush1.msra.mxu0 %v519
        %580 = vmatprep.subr.mxu0 0.0
        %581 = vmatpush2.msra.mxu0 0.0
        %582 = vmatprep.subr.mxu0 0.0
        %583 = vmatpush2.msra.mxu0 0.0
        %584 = vmatprep.subr.mxu0 0.0
        %585 = vmatpush2.msra.mxu0 0.0
        %586 = vmatprep.subr.mxu0 0.0
        %587 = vmatpush2.msra.mxu0 0.0
        %588 = vmatprep.subr.mxu0 0.0
        %589 = vmatpush2.msra.mxu0 0.0
        %590 = vmatprep.subr.mxu0 0.0
        %591 = vmatpush2.msra.mxu0 0.0
        %592 = vmatprep.subr.mxu0 0.0
        %593 = vmatpush2.msra.mxu0 0.0
        %594 = vmatprep.subr.mxu0 0.0
        %595 = vmatpush2.msra.mxu0 0.0
        %596 = vmatprep.subr.mxu0 0.0
        %597 = vmatpush2.msra.mxu0 0.0
        %598 = vmatprep.subr.mxu0 0.0
        %599 = vmatpush2.msra.mxu0 0.0
        %600 = vmatprep.subr.mxu0 0.0
        %601 = vmatpush2.msra.mxu0 0.0
        %602 = vmatprep.subr.mxu0 0.0
        %603 = vmatpush2.msra.mxu0 0.0
        %604 = vmatprep.subr.mxu0 0.0
        %605 = vmatpush2.msra.mxu0 0.0
        %606 = vmatprep.subr.mxu0 0.0
        %607 = vmatpush2.msra.mxu0 0.0
        %608 = vmatprep.subr.mxu0 0.0
        %609 = vmatpush2.msra.mxu0 0.0
        %610 = vmatprep.subr.mxu0 0.0
        %611 = vmatpush2.msra.mxu0 0.0
        %612 = vmatprep.mubr.f32.mxu0 0.0
        %613 = vmatmul.mubr.f32.gmra.mxu0 %v525
        %v614 = vpop.f32.mrf.mxu0
        %v615 = vadd.f32 0.0, %v614
        %v616 = vpop.f32.mrf.mxu0
        %617 = vmatprep.mubr.f32.mxu0 0.0
        %618 = vmatmul.mubr.f32.gmra.mxu0 %v528
        %v619 = vpop.f32.mrf.mxu0
        %v620 = vadd.f32 0.0, %v619
        %v621 = vpop.f32.mrf.mxu0
        %622 = vmatprep.mubr.f32.mxu0 0.0
        %623 = vmatmul.mubr.f32.gmra.mxu0 %v531
        %v624 = vpop.f32.mrf.mxu0
        %v625 = vadd.f32 0.0, %v624
        %v626 = vpop.f32.mrf.mxu0
        %627 = vmatprep.mubr.f32.mxu0 0.0
        %628 = vmatmul.mubr.f32.gmra.mxu0 %v534
        %v629 = vpop.f32.mrf.mxu0
        %v630 = vadd.f32 0.0, %v629
        %v631 = vpop.f32.mrf.mxu0
        %632 = vmatprep.mubr.f32.mxu0 0.0
        %633 = vmatmul.mubr.f32.gmra.mxu0 %v537
        %v634 = vpop.f32.mrf.mxu0
        %v635 = vadd.f32 0.0, %v634
        %v636 = vpop.f32.mrf.mxu0
        %637 = vmatprep.mubr.f32.mxu0 0.0
        %638 = vmatmul.mubr.f32.gmra.mxu0 %v540
        %v639 = vpop.f32.mrf.mxu0
        %v640 = vadd.f32 0.0, %v639
        %v641 = vpop.f32.mrf.mxu0
        %642 = vmatprep.mubr.f32.mxu0 0.0
        %643 = vmatmul.mubr.f32.gmra.mxu0 %v543
        %v644 = vpop.f32.mrf.mxu0
        %v645 = vadd.f32 0.0, %v644
        %v646 = vpop.f32.mrf.mxu0
        %647 = vmatprep.mubr.f32.mxu0 0.0
        %648 = vmatmul.mubr.f32.gmra.mxu0 %v546
        %v649 = vpop.f32.mrf.mxu0
        %v650 = vadd.f32 0.0, %v649
        %v651 = vpop.f32.mrf.mxu0
        %652 = vdwg.mxu0
        %653 = vst [vmem:[%s311] sm:$0xff] %v615
        %654 = vst [vmem:[%s311 + $0x8] sm:$0xff] %v620
        %655 = vst [vmem:[%s311 + $0x10] sm:$0xff] %v625
        %656 = vst [vmem:[%s311 + $0x18] sm:$0xff] %v630
        %657 = vst [vmem:[%s311 + $0x20] sm:$0xff] %v635
        %658 = vst [vmem:[%s311 + $0x28] sm:$0xff] %v640
        %659 = vst [vmem:[%s311 + $0x30] sm:$0xff] %v645
        %660 = vst [vmem:[%s311 + $0x38] sm:$0xff] %v650
        %s661 = sand.u32 %s157, 1
        %s662 = scalar_lea.sflag [#allocation5], %s661
        %s663 = sand.u32 %s157, 1
        %s664 = smul.addr %s663, 64
        %s665 = scalar_lea.vmem [#allocation11], %s664
        // Predicated region
        $region57: #{tpu_custom_call.1} parent=35 // pred_check
          %p666 = pneg %p167
        $region58: #{tpu_custom_call.1} parent=35 // pred_check_branch
          %668 = sbr.rel (%p666) target = $region60
        $region59: #{tpu_custom_call.1} parent=35 // pred_region
          %s669 = smul.u32 8, %s31
          %s671 = ssub.s32 1024, 1024
          %672 = vsyncadd %s662, %s671
          %s673 = sadd.s32 %s32, %s669
          %s674 = smul.addr %s30, 8
          %s675 = sadd.s32 %s673, %s674
          %s676 = smul.addr %s675, 128
          %s677 = scalar_lea.hbm %s4, %s676
          %s678 = sshll.u32 %s665, 4
          %s679 = int_to_ptr.vmem [resolvable:$true] %s678
          %684 = dma.vmem_to_hbm [thread:$0]  %s679, 1024, %s677, %s662, 128, 128, 8
        $region60: #{tpu_custom_call.1} parent=35 // pred_fallthru
          _
      $region36: #{tpu_custom_call.1} parent=5 // pred_fallthru
        _
      %p685 = scmp.le.s32.totalorder 2, %s20
      // Predicated region
      $region61: #{tpu_custom_call.1} parent=5 // pred_check
        %p686 = pneg %p685
      $region62: #{tpu_custom_call.1} parent=5 // pred_check_branch
        %688 = sbr.rel (%p686) target = $region64
      $region63: #{tpu_custom_call.1} parent=5 // pred_region
        %s689 = ssub.s32 %s20, 2
        // Predicated region
        $region65: #{tpu_custom_call.1} parent=63 // pred_check
          %p690 = pneg %p173
        $region66: #{tpu_custom_call.1} parent=63 // pred_check_branch
          %692 = sbr.rel (%p690) target = $region68
        $region67: #{tpu_custom_call.1} parent=63 // pred_region
          %s693 = sand.u32 %s158, 1
          %s694 = scalar_lea.sflag [#allocation5], %s693
          %s695 = sand.u32 %s158, 1
          %s696 = smul.addr %s695, 64
          %s697 = scalar_lea.vmem [#allocation11], %s696
          %698 = dma.done %s694, 1024
        $region68: #{tpu_custom_call.1} parent=63 // pred_fallthru
          _
      $region64: #{tpu_custom_call.1} parent=5 // pred_fallthru
        _
    $region6: #{tpu_custom_call.1} parent=1 // loop_footer
      %s24 = sadd.s32 1, %s20
    $region7: #{tpu_custom_call.1} parent=1 // loop_footer_branch
      %19 = sbr.rel target = $region3
    $region8: #{tpu_custom_call.1} parent=1 // loop_exit
      _
    %699 = vsyncpa [#allocation4], 1
    %s700 = scalar_lea.sflag [#allocation4], 1
    %701 = vsyncpa %s700, 1
    %702 = vsyncpa [#allocation7], 1
    %s703 = scalar_lea.sflag [#allocation7], 1
    %704 = vsyncpa %s703, 1
    %705 = vsyncpa [#allocation10], 1
    %706 = vsyncpa [#allocation5], 1
    %s707 = scalar_lea.sflag [#allocation5], 1
    %708 = vsyncpa %s707, 1

</llo_original>
